<compile_context>
chip_gen: v5e
topology: v5e:2x2
jax: 0.10.0
libtpu: 0.0.40
codegen_flags: <defaults>
</compile_context>

<pallas_src>
import jax
import jax.numpy as jnp
from jax.experimental import pallas as pl
from jax.experimental.pallas import tpu as pltpu

_LANE = 128          # lane width
_TILE_B_ALIGN = 16   # batch-tile alignment (covers f32 (8,128) and bf16 (16,128) tiling)


def _round_up(x, m):
    return ((x + m - 1) // m) * m


def init_mlp_params(key, d_in, d_hidden, d_out, dtype=jnp.float32):
    k1, k2 = jax.random.split(key)
    scale1 = 1.0 / jnp.sqrt(jnp.float32(d_in))
    scale2 = 1.0 / jnp.sqrt(jnp.float32(d_hidden))
    w1 = (jax.random.normal(k1, (d_in, d_hidden), jnp.float32) * scale1).astype(dtype)
    b1 = jnp.zeros((1, d_hidden), dtype)
    w2 = (jax.random.normal(k2, (d_hidden, d_out), jnp.float32) * scale2).astype(dtype)
    b2 = jnp.zeros((1, d_out), dtype)
    return (w1, b1, w2, b2)


def pack_invar_senn_params(params1, params2, d1, d2, dtype=jnp.float32):
    """Pack both disentanglers for the fused kernel.

    disentangler2 : e1 [*, d1] -> e2_rec [*, d2]   (hidden H2)
    disentangler1 : e2 [*, d2] -> e1_rec [*, d1]   (hidden H1)

    Layer 1 is block-diagonal with the shared hidden axis padded to a 128-lane
    multiple (lane-dense hidden slab).  Layer 2 is split into two narrow weight
    blocks (hid_pad x d2, hid_pad x d1) so each reconstruction comes out at its
    native width.  Zero rows/cols guarantee the two disentanglers never mix.
    """
    w1_a, b1_a, w2_a, b2_a = params2      # disentangler2: acts on e1
    w1_b, b1_b, w2_b, b2_b = params1      # disentangler1: acts on e2
    H2 = w1_a.shape[1]
    H1 = w1_b.shape[1]
    hid_pad = _round_up(H2 + H1, _LANE)

    W1 = jnp.zeros((d1 + d2, hid_pad), dtype)
    W1 = W1.at[0:d1, 0:H2].set(w1_a.astype(dtype))
    W1 = W1.at[d1:d1 + d2, H2:H2 + H1].set(w1_b.astype(dtype))

    B1 = jnp.zeros((1, hid_pad), dtype)
    B1 = B1.at[:, 0:H2].set(jnp.reshape(b1_a, (1, H2)).astype(dtype))
    B1 = B1.at[:, H2:H2 + H1].set(jnp.reshape(b1_b, (1, H1)).astype(dtype))

    W2a = jnp.zeros((hid_pad, d2), dtype).at[0:H2, :].set(w2_a.astype(dtype))
    B2a = jnp.reshape(b2_a, (1, d2)).astype(dtype)

    W2b = jnp.zeros((hid_pad, d1), dtype).at[H2:H2 + H1, :].set(w2_b.astype(dtype))
    B2b = jnp.reshape(b2_b, (1, d1)).astype(dtype)

    meta = dict(d1=d1, d2=d2, hid_pad=hid_pad)
    return (W1, B1, W2a, B2a, W2b, B2b), meta


def make_invar_senn_m2_forward(meta, *, max_batch_tile=2048):
    """Build the fused forward.  `meta` dims are static Python ints.

    `max_batch_tile` caps the rows per grid step.  At 2048 the double-buffered
    activation/output tiles plus the (tb, 128) hidden slab stay comfortably
    under every generation's scoped-VMEM default (v5e 16 MiB, v6e/v7x 32 MiB).
    Raise it (and pass vmem_limit_bytes in CompilerParams) only for very large
    batches on v6e/v7x.
    """
    d1, d2, hid_pad = meta["d1"], meta["d2"], meta["hid_pad"]
    max_batch_tile = max(_TILE_B_ALIGN, _round_up(max_batch_tile, _TILE_B_ALIGN))

    def kernel(e1_ref, e2_ref, w1_ref, b1_ref, w2a_ref, b2a_ref, w2b_ref, b2b_ref,
               e1rec_ref, e2rec_ref):
        # Layer 1: block-diagonal packed W1 consumed via static row slices, so
        # the two native-width inputs never need a padded/concatenated HBM slab.
        h = (
            jnp.dot(e1_ref[...], w1_ref[0:d1, :],
                    preferred_element_type=jnp.float32)
            + jnp.dot(e2_ref[...], w1_ref[d1:d1 + d2, :],
                      preferred_element_type=jnp.float32)
            + b1_ref[...]
        )
        h = jnp.maximum(h, 0.0).astype(w2a_ref.dtype)
        # Layer 2: two narrow outputs straight from the shared 128-lane hidden slab.
        e2rec_ref[...] = (
            jnp.dot(h, w2a_ref[...], preferred_element_type=jnp.float32) + b2a_ref[...]
        ).astype(e2rec_ref.dtype)
        e1rec_ref[...] = (
            jnp.dot(h, w2b_ref[...], preferred_element_type=jnp.float32) + b2b_ref[...]
        ).astype(e1rec_ref.dtype)

    def forward(e1, e2, W1, B1, W2a, B2a, W2b, B2b):
        B = e1.shape[0]
        out_dtype = jnp.result_type(e1.dtype, e2.dtype)

        # Batch tile selection (host-side Python ints):
        #   * B > cap          -> tiles of `max_batch_tile`, ragged last block.
        #   * moderate B       -> split into 2 aligned tiles so the "parallel"
        #                         grid can feed both v7x TensorCores.
        #   * tiny B           -> one full-extent batch block (always legal).
        if B > max_batch_tile:
            tb = max_batch_tile
        elif B > 2 * _TILE_B_ALIGN:
            tb = _round_up((B + 1) // 2, _TILE_B_ALIGN)
        else:
            tb = B
        grid = ((B + tb - 1) // tb,)   # ragged last block; OOB writes are masked

        e1_rec, e2_rec = pl.pallas_call(
            kernel,
            out_shape=(
                jax.ShapeDtypeStruct((B, d1), out_dtype),
                jax.ShapeDtypeStruct((B, d2), out_dtype),
            ),
            grid=grid,
            in_specs=[
                # Activations: native widths (full-extent last dim), batch-tiled.
                pl.BlockSpec((tb, d1), lambda i: (i, 0)),
                pl.BlockSpec((tb, d2), lambda i: (i, 0)),
                # Weights/biases: constant index_map -> grid-invariant, kept
                # VMEM-resident across all batch-grid steps (no per-step re-DMA).
                pl.BlockSpec((d1 + d2, hid_pad), lambda i: (0, 0)),
                pl.BlockSpec((1, hid_pad), lambda i: (0, 0)),
                pl.BlockSpec((hid_pad, d2), lambda i: (0, 0)),
                pl.BlockSpec((1, d2), lambda i: (0, 0)),
                pl.BlockSpec((hid_pad, d1), lambda i: (0, 0)),
                pl.BlockSpec((1, d1), lambda i: (0, 0)),
            ],
            out_specs=(
                pl.BlockSpec((tb, d1), lambda i: (i, 0)),   # e1_reconstructed
                pl.BlockSpec((tb, d2), lambda i: (i, 0)),   # e2_reconstructed
            ),
            compiler_params=pltpu.CompilerParams(
                dimension_semantics=("parallel",),   # batch axis -> v7x dual-TC
            ),
        )(e1, e2, W1, B1, W2a, B2a, W2b, B2b)
        return e1_rec, e2_rec

    return forward


if __name__ == "__main__":
    key = jax.random.PRNGKey(0)
    k_e1, k_e2, k_p1, k_p2, k_b1, k_b2 = jax.random.split(key, 6)

    d1 = 32      # dim of e1
    d2 = 16      # dim of e2
    hidden = 64  # disentangler hidden width

    # disentangler1: e2 -> e1_reconstructed   (d2 -> hidden -> d1)
    params1 = init_mlp_params(k_p1, d2, hidden, d1)
    # disentangler2: e1 -> e2_reconstructed   (d1 -> hidden -> d2)
    params2 = init_mlp_params(k_p2, d1, hidden, d2)

    def ref_mlp(x, w1, b1, w2, b2):
        return jnp.maximum(x @ w1 + b1, 0.0) @ w2 + b2

    # ---- f32 path: tiny batch, tight tolerance -----------------------------
    batch = 2
    e1 = jax.random.normal(k_e1, (batch, d1), jnp.float32)
    e2 = jax.random.normal(k_e2, (batch, d2), jnp.float32)
    packed_f32, meta = pack_invar_senn_params(params1, params2, d1, d2, jnp.float32)
    forward_f32 = jax.jit(make_invar_senn_m2_forward(meta))
    e1_rec, e2_rec = forward_f32(e1, e2, *packed_f32)
    jax.block_until_ready((e1_rec, e2_rec))

    assert e1_rec.shape == (batch, d1) and e2_rec.shape == (batch, d2)
    assert jnp.allclose(e1_rec, ref_mlp(e2, *params1), atol=1e-5, rtol=1e-5)
    assert jnp.allclose(e2_rec, ref_mlp(e1, *params2), atol=1e-5, rtol=1e-5)

    # ---- bf16 path: ragged batch, 2-step parallel grid, looser tolerance ---
    batch_b = 200   # not a tile multiple -> exercises the masked ragged last block
    e1b = jax.random.normal(k_b1, (batch_b, d1), jnp.float32)
    e2b = jax.random.normal(k_b2, (batch_b, d2), jnp.float32)
    packed_bf16, meta_b = pack_invar_senn_params(params1, params2, d1, d2, jnp.bfloat16)
    forward_bf16 = jax.jit(make_invar_senn_m2_forward(meta_b))
    e1_rec_b, e2_rec_b = forward_bf16(
        e1b.astype(jnp.bfloat16), e2b.astype(jnp.bfloat16), *packed_bf16)
    jax.block_until_ready((e1_rec_b, e2_rec_b))

    assert e1_rec_b.shape == (batch_b, d1) and e2_rec_b.shape == (batch_b, d2)
    assert e1_rec_b.dtype == jnp.bfloat16 and e2_rec_b.dtype == jnp.bfloat16
    assert jnp.allclose(e1_rec_b.astype(jnp.float32), ref_mlp(e2b, *params1),
                        atol=1e-1, rtol=1e-1)
    assert jnp.allclose(e2_rec_b.astype(jnp.float32), ref_mlp(e1b, *params2),
                        atol=1e-1, rtol=1e-1)

    print("KERNEL_OK")
</pallas_src>

<mosaic_0001>
module attributes {stable_mosaic.version = 11 : i64} {
  func.func @kernel(%arg0: i32, %arg1: memref<2x32xf32, #tpu.memory_space<vmem>>, %arg2: memref<2x16xf32, #tpu.memory_space<vmem>>, %arg3: memref<48x128xf32, #tpu.memory_space<vmem>>, %arg4: memref<1x128xf32, #tpu.memory_space<vmem>>, %arg5: memref<128x16xf32, #tpu.memory_space<vmem>>, %arg6: memref<1x16xf32, #tpu.memory_space<vmem>>, %arg7: memref<128x32xf32, #tpu.memory_space<vmem>>, %arg8: memref<1x32xf32, #tpu.memory_space<vmem>>, %arg9: memref<2x32xf32, #tpu.memory_space<vmem>>, %arg10: memref<2x16xf32, #tpu.memory_space<vmem>>) attributes {dimension_semantics = [#tpu.dimension_semantics<parallel>], iteration_bounds = array<i64: 1>, scalar_prefetch = 0 : i64, scratch_operands = 0 : i64, tpu.core_type = #tpu.core_type<tc>, window_params = [{transform_indices = @transform_0, window_bounds = array<i64: 2, 32>}, {transform_indices = @transform_1, window_bounds = array<i64: 2, 16>}, {pipeline_mode = #tpu.pipeline_mode<synchronous>, transform_indices = @transform_2, window_bounds = array<i64: 48, 128>}, {pipeline_mode = #tpu.pipeline_mode<synchronous>, transform_indices = @transform_3, window_bounds = array<i64: 1, 128>}, {pipeline_mode = #tpu.pipeline_mode<synchronous>, transform_indices = @transform_4, window_bounds = array<i64: 128, 16>}, {pipeline_mode = #tpu.pipeline_mode<synchronous>, transform_indices = @transform_5, window_bounds = array<i64: 1, 16>}, {pipeline_mode = #tpu.pipeline_mode<synchronous>, transform_indices = @transform_6, window_bounds = array<i64: 128, 32>}, {pipeline_mode = #tpu.pipeline_mode<synchronous>, transform_indices = @transform_7, window_bounds = array<i64: 1, 32>}, {transform_indices = @transform_8, window_bounds = array<i64: 2, 32>}, {transform_indices = @transform_9, window_bounds = array<i64: 2, 16>}]} {
    %c0 = arith.constant 0 : index
    %c0_0 = arith.constant 0 : index
    %0 = vector.load %arg1[%c0, %c0_0] : memref<2x32xf32, #tpu.memory_space<vmem>>, vector<2x32xf32>
    %c0_1 = arith.constant 0 : index
    %c0_2 = arith.constant 0 : index
    %1 = vector.load %arg3[%c0_1, %c0_2] : memref<48x128xf32, #tpu.memory_space<vmem>>, vector<32x128xf32>
    %cst = arith.constant dense<0.000000e+00> : vector<2x128xf32>
    %2 = tpu.matmul %0, %1, %cst {dimension_numbers = #tpu.dot_dimension_numbers<[1], [0], [0], [1], [0, 0, 1, 1], [], []>} : vector<2x32xf32>, vector<32x128xf32>, vector<2x128xf32> -> vector<2x128xf32>
    %c0_3 = arith.constant 0 : index
    %c0_4 = arith.constant 0 : index
    %3 = vector.load %arg2[%c0_3, %c0_4] : memref<2x16xf32, #tpu.memory_space<vmem>>, vector<2x16xf32>
    %c32 = arith.constant 32 : index
    %c0_5 = arith.constant 0 : index
    %4 = vector.load %arg3[%c32, %c0_5] : memref<48x128xf32, #tpu.memory_space<vmem>>, vector<16x128xf32>
    %cst_6 = arith.constant dense<0.000000e+00> : vector<2x128xf32>
    %5 = tpu.matmul %3, %4, %cst_6 {dimension_numbers = #tpu.dot_dimension_numbers<[1], [0], [0], [1], [0, 0, 1, 1], [], []>} : vector<2x16xf32>, vector<16x128xf32>, vector<2x128xf32> -> vector<2x128xf32>
    %6 = arith.addf %2, %5 : vector<2x128xf32>
    %c0_7 = arith.constant 0 : index
    %c0_8 = arith.constant 0 : index
    %7 = vector.load %arg4[%c0_7, %c0_8] : memref<1x128xf32, #tpu.memory_space<vmem>>, vector<1x128xf32>
    %8 = vector.broadcast %7 : vector<1x128xf32> to vector<2x128xf32>
    %9 = arith.addf %6, %8 : vector<2x128xf32>
    %cst_9 = arith.constant 0.000000e+00 : f32
    %10 = vector.broadcast %cst_9 : f32 to vector<2x128xf32>
    %11 = arith.maximumf %9, %10 : vector<2x128xf32>
    %c0_10 = arith.constant 0 : index
    %c0_11 = arith.constant 0 : index
    %12 = vector.load %arg5[%c0_10, %c0_11] : memref<128x16xf32, #tpu.memory_space<vmem>>, vector<128x16xf32>
    %cst_12 = arith.constant dense<0.000000e+00> : vector<2x16xf32>
    %13 = tpu.matmul %11, %12, %cst_12 {dimension_numbers = #tpu.dot_dimension_numbers<[1], [0], [0], [1], [0, 0, 1, 1], [], []>} : vector<2x128xf32>, vector<128x16xf32>, vector<2x16xf32> -> vector<2x16xf32>
    %c0_13 = arith.constant 0 : index
    %c0_14 = arith.constant 0 : index
    %14 = vector.load %arg6[%c0_13, %c0_14] : memref<1x16xf32, #tpu.memory_space<vmem>>, vector<1x16xf32>
    %15 = vector.broadcast %14 : vector<1x16xf32> to vector<2x16xf32>
    %16 = arith.addf %13, %15 : vector<2x16xf32>
    %c0_15 = arith.constant 0 : index
    %c0_16 = arith.constant 0 : index
    %17 = vector.load %arg10[%c0_15, %c0_16] : memref<2x16xf32, #tpu.memory_space<vmem>>, vector<2x16xf32>
    tpu.vector_store %arg10[%c0_15, %c0_16], %16 {strides = array<i32>} : memref<2x16xf32, #tpu.memory_space<vmem>>, vector<2x16xf32>,
    %c0_17 = arith.constant 0 : index
    %c0_18 = arith.constant 0 : index
    %18 = vector.load %arg7[%c0_17, %c0_18] : memref<128x32xf32, #tpu.memory_space<vmem>>, vector<128x32xf32>
    %cst_19 = arith.constant dense<0.000000e+00> : vector<2x32xf32>
    %19 = tpu.matmul %11, %18, %cst_19 {dimension_numbers = #tpu.dot_dimension_numbers<[1], [0], [0], [1], [0, 0, 1, 1], [], []>} : vector<2x128xf32>, vector<128x32xf32>, vector<2x32xf32> -> vector<2x32xf32>
    %c0_20 = arith.constant 0 : index
    %c0_21 = arith.constant 0 : index
    %20 = vector.load %arg8[%c0_20, %c0_21] : memref<1x32xf32, #tpu.memory_space<vmem>>, vector<1x32xf32>
    %21 = vector.broadcast %20 : vector<1x32xf32> to vector<2x32xf32>
    %22 = arith.addf %19, %21 : vector<2x32xf32>
    %c0_22 = arith.constant 0 : index
    %c0_23 = arith.constant 0 : index
    %23 = vector.load %arg9[%c0_22, %c0_23] : memref<2x32xf32, #tpu.memory_space<vmem>>, vector<2x32xf32>
    tpu.vector_store %arg9[%c0_22, %c0_23], %22 {strides = array<i32>} : memref<2x32xf32, #tpu.memory_space<vmem>>, vector<2x32xf32>,
    return
  }
  func.func @transform_0(%arg0: i32) -> (i32, i32) {
    %c0_i32 = arith.constant 0 : i32
    %c0_i32_0 = arith.constant 0 : i32
    return %arg0, %c0_i32 : i32, i32
  }
  func.func @transform_1(%arg0: i32) -> (i32, i32) {
    %c0_i32 = arith.constant 0 : i32
    %c0_i32_0 = arith.constant 0 : i32
    return %arg0, %c0_i32 : i32, i32
  }
  func.func @transform_2(%arg0: i32) -> (i32, i32) {
    %c0_i32 = arith.constant 0 : i32
    %c0_i32_0 = arith.constant 0 : i32
    %c0_i32_1 = arith.constant 0 : i32
    return %c0_i32, %c0_i32_0 : i32, i32
  }
  func.func @transform_3(%arg0: i32) -> (i32, i32) {
    %c0_i32 = arith.constant 0 : i32
    %c0_i32_0 = arith.constant 0 : i32
    %c0_i32_1 = arith.constant 0 : i32
    return %c0_i32, %c0_i32_0 : i32, i32
  }
  func.func @transform_4(%arg0: i32) -> (i32, i32) {
    %c0_i32 = arith.constant 0 : i32
    %c0_i32_0 = arith.constant 0 : i32
    %c0_i32_1 = arith.constant 0 : i32
    return %c0_i32, %c0_i32_0 : i32, i32
  }
  func.func @transform_5(%arg0: i32) -> (i32, i32) {
    %c0_i32 = arith.constant 0 : i32
    %c0_i32_0 = arith.constant 0 : i32
    %c0_i32_1 = arith.constant 0 : i32
    return %c0_i32, %c0_i32_0 : i32, i32
  }
  func.func @transform_6(%arg0: i32) -> (i32, i32) {
    %c0_i32 = arith.constant 0 : i32
    %c0_i32_0 = arith.constant 0 : i32
    %c0_i32_1 = arith.constant 0 : i32
    return %c0_i32, %c0_i32_0 : i32, i32
  }
  func.func @transform_7(%arg0: i32) -> (i32, i32) {
    %c0_i32 = arith.constant 0 : i32
    %c0_i32_0 = arith.constant 0 : i32
    %c0_i32_1 = arith.constant 0 : i32
    return %c0_i32, %c0_i32_0 : i32, i32
  }
  func.func @transform_8(%arg0: i32) -> (i32, i32) {
    %c0_i32 = arith.constant 0 : i32
    %c0_i32_0 = arith.constant 0 : i32
    return %arg0, %c0_i32 : i32, i32
  }
  func.func @transform_9(%arg0: i32) -> (i32, i32) {
    %c0_i32 = arith.constant 0 : i32
    %c0_i32_0 = arith.constant 0 : i32
    return %arg0, %c0_i32 : i32, i32
  }
}

</mosaic_0001>

<llo_original>
// kernel: forward.1
$region0: #{forward.1}
  #allocation0 [shape = 'u32[]', space=smem, size = 0x4, offset = 0x4, fixed_abs, tag = 'smem constant byte address 0x4 - core index']
  #allocation1 [shape = 'u32[72,128]{1,0:T(1,128)}', space=vmem, size = 0x9000, scoped, tag = 'internal scratch']
  %s0 = inlined_call_operand.vmem [shape: f32[2,32], index: 0, kind: input, shape index: {}]
  %s1 = inlined_call_operand.vmem [shape: f32[2,16], index: 1, kind: input, shape index: {}]
  %s2 = inlined_call_operand.vmem [shape: f32[48,128], index: 2, kind: input, shape index: {}]
  %s3 = inlined_call_operand.vmem [shape: f32[1,128], index: 3, kind: input, shape index: {}]
  %s4 = inlined_call_operand.vmem [shape: f32[128,16], index: 4, kind: input, shape index: {}]
  %s5 = inlined_call_operand.vmem [shape: f32[1,16], index: 5, kind: input, shape index: {}]
  %s6 = inlined_call_operand.vmem [shape: f32[128,32], index: 6, kind: input, shape index: {}]
  %s7 = inlined_call_operand.vmem [shape: f32[1,32], index: 7, kind: input, shape index: {}]
  %s8 = inlined_call_operand.hbm [shape: f32[2,32], index: 8, kind: output, shape index: {0}]
  %s9 = inlined_call_operand.hbm [shape: f32[2,16], index: 9, kind: output, shape index: {1}]
  %10 = xla_tuple %s8, %s9
  %s11 = sld [smem:[#allocation0]]
  $region50: #{forward.1} parent=0
    _
  %s13 = ssub.s32 1, %s11
  %s14 = scalar_select 0, %s13, %s11
  $region1: #{forward.1} parent=0
    #allocation2 [shape = 'u8[1024]{0}', space=vmem, size = 0x400, scoped, tag = 'output window, operand 0, single buffered']
    #allocation3 [shape = 's32[1]{0}', space=sflag, size = 0x4, scoped, tag = 'scoped memory for forward.1']
    #allocation4 [shape = 'u8[1024]{0}', space=vmem, size = 0x400, scoped, tag = 'output window, operand 1, single buffered']
    #allocation5 [shape = 's32[1]{0}', space=sflag, size = 0x4, scoped, tag = 'scoped memory for forward.1']
    %15 = vsyncpa [#allocation3], 0
    %16 = vsyncpa [#allocation5], 0
    // Predicated region
    $region2: #{forward.1} parent=1 // pred_check
      _
    $region3: #{forward.1} parent=1 // pred_check_branch
      %18 = sbr.rel (0) target = $region5
    $region4: #{forward.1} parent=1 // pred_region
      _
    $region5: #{forward.1} parent=1 // pred_fallthru
      _
    // Predicated region
    $region6: #{forward.1} parent=1 // pred_check
      _
    $region7: #{forward.1} parent=1 // pred_check_branch
      %20 = sbr.rel (0) target = $region9
    $region8: #{forward.1} parent=1 // pred_region
      _
    $region9: #{forward.1} parent=1 // pred_fallthru
      _
    // Predicated region
    $region10: #{forward.1} parent=1 // pred_check
      _
    $region11: #{forward.1} parent=1 // pred_check_branch
      %22 = sbr.rel (0) target = $region13
    $region12: #{forward.1} parent=1 // pred_region
      _
    $region13: #{forward.1} parent=1 // pred_fallthru
      _
    // Predicated region
    $region14: #{forward.1} parent=1 // pred_check
      _
    $region15: #{forward.1} parent=1 // pred_check_branch
      %24 = sbr.rel (0) target = $region17
    $region16: #{forward.1} parent=1 // pred_region
      _
    $region17: #{forward.1} parent=1 // pred_fallthru
      _
    // Predicated region
    $region18: #{forward.1} parent=1 // pred_check
      _
    $region19: #{forward.1} parent=1 // pred_check_branch
      %26 = sbr.rel (0) target = $region21
    $region20: #{forward.1} parent=1 // pred_region
      _
    $region21: #{forward.1} parent=1 // pred_fallthru
      _
    // Predicated region
    $region22: #{forward.1} parent=1 // pred_check
      _
    $region23: #{forward.1} parent=1 // pred_check_branch
      %28 = sbr.rel (0) target = $region25
    $region24: #{forward.1} parent=1 // pred_region
      _
    $region25: #{forward.1} parent=1 // pred_fallthru
      _
    // Predicated region
    $region26: #{forward.1} parent=1 // pred_check
      _
    $region27: #{forward.1} parent=1 // pred_check_branch
      %30 = sbr.rel (0) target = $region29
    $region28: #{forward.1} parent=1 // pred_region
      _
    $region29: #{forward.1} parent=1 // pred_fallthru
      _
    // Predicated region
    $region30: #{forward.1} parent=1 // pred_check
      _
    $region31: #{forward.1} parent=1 // pred_check_branch
      %32 = sbr.rel (0) target = $region33
    $region32: #{forward.1} parent=1 // pred_region
      _
    $region33: #{forward.1} parent=1 // pred_fallthru
      _
    %v33 = vld [vmem:[%s0] sm:$0x3]
    %v34 = vld [vmem:[%s2] sm:$0xff]
    %v35 = vld [vmem:[%s2 + $0x8] sm:$0xff]
    %v36 = vld [vmem:[%s2 + $0x10] sm:$0xff]
    %v37 = vld [vmem:[%s2 + $0x18] sm:$0xff]
    %v38 = vld [vmem:[%s1] sm:$0x3]
    %v39 = vld [vmem:[%s2 + $0x20] sm:$0xff]
    %v40 = vld [vmem:[%s2 + $0x28] sm:$0xff]
    %vm41 = vcmask 130048
    %v43 = vsel %vm41, %v38, 0
    %45 = vmatpush.msra.mxu0 0.0
    %46 = vmatpush.msra.mxu0 0.0
    %47 = vmatpush.msra.mxu0 0.0
    %48 = vmatpush.msra.mxu0 0.0
    %49 = vmatpush.msra.mxu0 0.0
    %50 = vmatpush.msra.mxu0 0.0
    %51 = vmatpush.msra.mxu0 0.0
    %52 = vmatpush.msra.mxu0 0.0
    %53 = vmatpush.msra.mxu0 0.0
    %54 = vmatpush.msra.mxu0 0.0
    %55 = vmatpush.msra.mxu0 0.0
    %56 = vmatpush.msra.mxu0 0.0
    %57 = vmatpush.msra.mxu0 0.0
    %58 = vmatpush.msra.mxu0 0.0
    %59 = vmatpush.msra.mxu0 %v40
    %60 = vmatpush.msra.mxu0 %v39
    %61 = vmatmul.f32.gmra.mxu0 %v43
    %v62 = vpop.f32.mrf.mxu0
    %v63 = vadd.f32 0.0, %v62
    %64 = vdwg.mxu0
    %vm65 = vcmask 261120
    %v67 = vsel %vm65, %v33, 0
    %69 = vmatpush.msra.mxu0 0.0
    %70 = vmatpush.msra.mxu0 0.0
    %71 = vmatpush.msra.mxu0 0.0
    %72 = vmatpush.msra.mxu0 0.0
    %73 = vmatpush.msra.mxu0 0.0
    %74 = vmatpush.msra.mxu0 0.0
    %75 = vmatpush.msra.mxu0 0.0
    %76 = vmatpush.msra.mxu0 0.0
    %77 = vmatpush.msra.mxu0 0.0
    %78 = vmatpush.msra.mxu0 0.0
    %79 = vmatpush.msra.mxu0 0.0
    %80 = vmatpush.msra.mxu0 0.0
    %81 = vmatpush.msra.mxu0 %v37
    %82 = vmatpush.msra.mxu0 %v36
    %83 = vmatpush.msra.mxu0 %v35
    %84 = vmatpush.msra.mxu0 %v34
    %85 = vmatmul.f32.gmra.mxu0 %v67
    %v86 = vpop.f32.mrf.mxu0
    %v87 = vadd.f32 %v63, %v86
    %88 = vdwg.mxu0
    %v89 = vld [vmem:[%s3] sm:$0x1]
    %v91 = vperm.slane %v89, 0
    %v93 = vadd.f32 %v87, %v91
    %v94 = vmax.f32 %v93, 0.0
    %v95 = vld [vmem:[%s4] sm:$0xff]
    %v96 = vld [vmem:[%s4 + $0x8] sm:$0xff]
    %v97 = vld [vmem:[%s4 + $0x10] sm:$0xff]
    %v98 = vld [vmem:[%s4 + $0x18] sm:$0xff]
    %v99 = vld [vmem:[%s4 + $0x20] sm:$0xff]
    %v100 = vld [vmem:[%s4 + $0x28] sm:$0xff]
    %v101 = vld [vmem:[%s4 + $0x30] sm:$0xff]
    %v102 = vld [vmem:[%s4 + $0x38] sm:$0xff]
    %v103 = vld [vmem:[%s4 + $0x40] sm:$0xff]
    %v104 = vld [vmem:[%s4 + $0x48] sm:$0xff]
    %v105 = vld [vmem:[%s4 + $0x50] sm:$0xff]
    %v106 = vld [vmem:[%s4 + $0x58] sm:$0xff]
    %v107 = vld [vmem:[%s4 + $0x60] sm:$0xff]
    %v108 = vld [vmem:[%s4 + $0x68] sm:$0xff]
    %v109 = vld [vmem:[%s4 + $0x70] sm:$0xff]
    %v110 = vld [vmem:[%s4 + $0x78] sm:$0xff]
    %v111 = vld [vmem:[%s5] sm:$0x1]
    %v113 = vperm.slane %v111, 0
    %115 = vmatpush.msra.mxu0 %v110
    %116 = vmatpush.msra.mxu0 %v109
    %117 = vmatpush.msra.mxu0 %v108
    %118 = vmatpush.msra.mxu0 %v107
    %119 = vmatpush.msra.mxu0 %v106
    %120 = vmatpush.msra.mxu0 %v105
    %121 = vmatpush.msra.mxu0 %v104
    %122 = vmatpush.msra.mxu0 %v103
    %123 = vmatpush.msra.mxu0 %v102
    %124 = vmatpush.msra.mxu0 %v101
    %125 = vmatpush.msra.mxu0 %v100
    %126 = vmatpush.msra.mxu0 %v99
    %127 = vmatpush.msra.mxu0 %v98
    %128 = vmatpush.msra.mxu0 %v97
    %129 = vmatpush.msra.mxu0 %v96
    %130 = vmatpush.msra.mxu0 %v95
    %131 = vmatmul.f32.gmra.mxu0 %v94
    %v132 = vpop.f32.mrf.mxu0
    %v133 = vadd.f32 %v113, %v132
    %134 = vdwg.mxu0
    %vm135 = vcmask 123904
    %136 = vst.msk [vmem:[#allocation4] sm:$0x3] %vm135, %v133
    %v137 = vld [vmem:[%s6] sm:$0xff]
    %v138 = vld [vmem:[%s6 + $0x8] sm:$0xff]
    %v139 = vld [vmem:[%s6 + $0x10] sm:$0xff]
    %v140 = vld [vmem:[%s6 + $0x18] sm:$0xff]
    %v141 = vld [vmem:[%s6 + $0x20] sm:$0xff]
    %v142 = vld [vmem:[%s6 + $0x28] sm:$0xff]
    %v143 = vld [vmem:[%s6 + $0x30] sm:$0xff]
    %v144 = vld [vmem:[%s6 + $0x38] sm:$0xff]
    %v145 = vld [vmem:[%s6 + $0x40] sm:$0xff]
    %v146 = vld [vmem:[%s6 + $0x48] sm:$0xff]
    %v147 = vld [vmem:[%s6 + $0x50] sm:$0xff]
    %v148 = vld [vmem:[%s6 + $0x58] sm:$0xff]
    %v149 = vld [vmem:[%s6 + $0x60] sm:$0xff]
    %v150 = vld [vmem:[%s6 + $0x68] sm:$0xff]
    %v151 = vld [vmem:[%s6 + $0x70] sm:$0xff]
    %v152 = vld [vmem:[%s6 + $0x78] sm:$0xff]
    %v153 = vld [vmem:[%s7] sm:$0x1]
    %v155 = vperm.slane %v153, 0
    %157 = vmatpush.msra.mxu0 %v152
    %158 = vmatpush.msra.mxu0 %v151
    %159 = vmatpush.msra.mxu0 %v150
    %160 = vmatpush.msra.mxu0 %v149
    %161 = vmatpush.msra.mxu0 %v148
    %162 = vmatpush.msra.mxu0 %v147
    %163 = vmatpush.msra.mxu0 %v146
    %164 = vmatpush.msra.mxu0 %v145
    %165 = vmatpush.msra.mxu0 %v144
    %166 = vmatpush.msra.mxu0 %v143
    %167 = vmatpush.msra.mxu0 %v142
    %168 = vmatpush.msra.mxu0 %v141
    %169 = vmatpush.msra.mxu0 %v140
    %170 = vmatpush.msra.mxu0 %v139
    %171 = vmatpush.msra.mxu0 %v138
    %172 = vmatpush.msra.mxu0 %v137
    %173 = vmatmul.f32.gmra.mxu0 %v94
    %v174 = vpop.f32.mrf.mxu0
    %v175 = vadd.f32 %v155, %v174
    %176 = vdwg.mxu0
    %vm177 = vcmask 254976
    %178 = vst.msk [vmem:[#allocation2] sm:$0x3] %vm177, %v175
    // Predicated region
    $region34: #{forward.1} parent=1 // pred_check
      _
    $region35: #{forward.1} parent=1 // pred_check_branch
      %180 = sbr.rel (0) target = $region37
    $region36: #{forward.1} parent=1 // pred_region
      %182 = vsyncadd [#allocation3], 0
      %s184 = sshll.u32 [#allocation2], 4
      %s185 = int_to_ptr.vmem [resolvable:$true] %s184
      %s186 = sshll.u32 %s8, 4
      %s187 = int_to_ptr.hbm [resolvable:$true] %s186
      %189 = dma.vmem_to_hbm [thread:$0]  %s185, 32, %s187, [#allocation3]
    $region37: #{forward.1} parent=1 // pred_fallthru
      _
    // Predicated region
    $region38: #{forward.1} parent=1 // pred_check
      _
    $region39: #{forward.1} parent=1 // pred_check_branch
      %191 = sbr.rel (0) target = $region41
    $region40: #{forward.1} parent=1 // pred_region
      %193 = vsyncadd [#allocation5], 0
      %s195 = sshll.u32 [#allocation4], 4
      %s196 = int_to_ptr.vmem [resolvable:$true] %s195
      %s197 = sshll.u32 %s9, 4
      %s198 = int_to_ptr.hbm [resolvable:$true] %s197
      %200 = dma.vmem_to_hbm [thread:$0]  %s196, 32, %s198, [#allocation5]
    $region41: #{forward.1} parent=1 // pred_fallthru
      _
    // Predicated region
    $region42: #{forward.1} parent=1 // pred_check
      _
    $region43: #{forward.1} parent=1 // pred_check_branch
      %202 = sbr.rel (0) target = $region45
    $region44: #{forward.1} parent=1 // pred_region
      %204 = dma.done [#allocation3], 32
    $region45: #{forward.1} parent=1 // pred_fallthru
      _
    // Predicated region
    $region46: #{forward.1} parent=1 // pred_check
      _
    $region47: #{forward.1} parent=1 // pred_check_branch
      %206 = sbr.rel (0) target = $region49
    $region48: #{forward.1} parent=1 // pred_region
      %208 = dma.done [#allocation5], 32
    $region49: #{forward.1} parent=1 // pred_fallthru
      _
    %209 = vsyncpa [#allocation3], 1
    %210 = vsyncpa [#allocation5], 1

</llo_original>
